<compile_context>
chip_gen: v7x
topology: tpu7x:2x2x1
jax: 0.10.0
libtpu: 0.0.40
codegen_flags: <defaults>
</compile_context>

<pallas_src>
import functools

import jax
import jax.numpy as jnp
from jax import lax
from jax.experimental import pallas as pl
from jax.experimental.pallas import tpu as pltpu

PAD = 0
MAX_TILE = 1024                      # max tokens gathered per grid step
UNROLL = 8                           # inner-loop unroll factor
VMEM_TABLE_LIMIT_BYTES = 16 << 20    # table-resident fast path threshold (v7x-safe)


def _vmem_gather_kernel(tile, ids_ref, tab_ref, out_ref):
    # ids_ref : SMEM (n_tok_pad,) int32  scalar-prefetched (padded) token ids
    # tab_ref : VMEM (V, E)              full embedding table, resident
    # out_ref : VMEM (tile, E)           gathered embeddings for this tile
    base = pl.program_id(0) * tile

    def body(t, carry):
        idx = ids_ref[base + t]
        out_ref[pl.ds(t, 1), :] = tab_ref[pl.ds(idx, 1), :]
        return carry

    # Full tile every step (ids are padded) -> no per-iteration predicate.
    lax.fori_loop(0, tile, body, 0, unroll=UNROLL)


def _hbm_gather_kernel(tile, ids_ref, tab_ref, out_ref, sem):
    # ids_ref : SMEM (n_tok_pad,) int32  scalar-prefetched (padded) token ids
    # tab_ref : HBM  (V, E)              embedding table (never staged whole)
    # out_ref : VMEM (tile, E)           output block; BlockSpec writes it back
    # sem     : DMA semaphore shared by all row copies of this tile
    base = pl.program_id(0) * tile

    def start_one(t, carry):
        pltpu.make_async_copy(
            tab_ref.at[ids_ref[base + t]], out_ref.at[t], sem
        ).start()
        return carry

    def wait_one(t, carry):
        # Every started copy is exactly one (E,) row, so this descriptor's byte
        # count matches each outstanding copy.
        pltpu.make_async_copy(tab_ref.at[0], out_ref.at[0], sem).wait()
        return carry

    # Issue every row copy of this tile (unrolled, predicate-free), then drain.
    lax.fori_loop(0, tile, start_one, 0, unroll=UNROLL)
    lax.fori_loop(0, tile, wait_one, 0, unroll=UNROLL)


def _pick_tile(n_tok, emsize, itemsize):
    """Tokens per grid step: multiple of 8, >=2 tiles when possible, bounded so
    the double-buffered (tile, E) output block stays well under VMEM limits."""
    cap = max(8, (8 << 20) // max(1, 2 * emsize * itemsize))
    tile = min(MAX_TILE, cap, max(8, -(-n_tok // 2)))
    return max(8, (tile // 8) * 8)


@functools.partial(
    jax.jit, static_argnames=("dropout_emb", "training", "force_hbm_gather")
)
def embedder_forward(sequence, emb_table, dropout_emb=0.1, training=False,
                     force_hbm_gather=False):
    """sequence: (B, S) int token ids.  Returns (B, S, E) embeddings."""
    B, S = sequence.shape
    V, E = emb_table.shape
    itemsize = jnp.dtype(emb_table.dtype).itemsize
    n_tok = B * S

    tile = _pick_tile(n_tok, E, itemsize)
    n_tiles = -(-n_tok // tile)
    n_tok_pad = n_tiles * tile

    # Clamp defensively: an out-of-range id would otherwise address out of
    # bounds (PyTorch would raise instead).  Pad ids so every tile is full;
    # padded tokens gather row 0 into rows that are sliced away below.
    ids_flat = jnp.clip(sequence.reshape(-1).astype(jnp.int32), 0, V - 1)
    if n_tok_pad != n_tok:
        ids_flat = jnp.concatenate(
            [ids_flat, jnp.zeros((n_tok_pad - n_tok,), jnp.int32)]
        )

    table_bytes = V * E * itemsize
    out_block_bytes = tile * E * itemsize
    use_vmem_table = (table_bytes <= VMEM_TABLE_LIMIT_BYTES) and not force_hbm_gather

    out_spec = pl.BlockSpec((tile, E), lambda i, ids: (i, 0))

    if use_vmem_table:
        grid_spec = pltpu.PrefetchScalarGridSpec(
            num_scalar_prefetch=1,                                  # ids -> SMEM
            grid=(n_tiles,),
            in_specs=[pl.BlockSpec((V, E), lambda i, ids: (0, 0))],  # table resident
            out_specs=out_spec,
        )
        kernel = functools.partial(_vmem_gather_kernel, tile)
        vmem_budget = 2 * table_bytes + 2 * out_block_bytes + (2 << 20)
    else:
        grid_spec = pltpu.PrefetchScalarGridSpec(
            num_scalar_prefetch=1,                                  # ids -> SMEM
            grid=(n_tiles,),
            in_specs=[pl.BlockSpec(memory_space=pl.ANY)],           # table in HBM
            out_specs=out_spec,
            scratch_shapes=[pltpu.SemaphoreType.DMA],
        )
        kernel = functools.partial(_hbm_gather_kernel, tile)
        vmem_budget = 2 * out_block_bytes + (2 << 20)

    out_flat = pl.pallas_call(
        kernel,
        out_shape=jax.ShapeDtypeStruct((n_tok_pad, E), emb_table.dtype),
        grid_spec=grid_spec,
        compiler_params=pltpu.CompilerParams(
            dimension_semantics=("parallel",),                      # megacore split
            vmem_limit_bytes=min(max(vmem_budget, 32 << 20), 64 << 20),
        ),
    )(ids_flat, emb_table)

    word_rep = out_flat[:n_tok].reshape(B, S, E)

    # nn.Dropout in eval mode is the identity.
    if training and dropout_emb > 0.0:
        # TODO(synk): training-mode dropout via pltpu.prng_* inside the kernel.
        raise NotImplementedError("training-mode dropout not implemented")
    return word_rep


def init_embedder_params(key, emsize, src_vocab_size):
    """Deterministic init mirroring nn.Embedding(src_vocab_size, emsize, padding_idx=PAD)."""
    table = jax.random.normal(key, (src_vocab_size, emsize), dtype=jnp.float32)
    # padding_idx row is zeroed by nn.Embedding
    table = table.at[PAD].set(0.0)
    return table


if __name__ == "__main__":
    emsize = 32
    src_vocab_size = 64
    batch, seq = 2, 8

    key = jax.random.PRNGKey(0)
    k_tab, k_ids = jax.random.split(key)

    emb_table = init_embedder_params(k_tab, emsize, src_vocab_size)
    sequence = jax.random.randint(
        k_ids, (batch, seq), 0, src_vocab_size, dtype=jnp.int32
    )
    # make sure some PAD tokens are present
    sequence = sequence.at[0, 0].set(PAD)

    # reference: plain JAX embedding lookup
    ref = jnp.take(emb_table, sequence, axis=0)

    # Fast path: table resident in VMEM (auto-dispatched for this small table).
    out = embedder_forward(sequence, emb_table, dropout_emb=0.1, training=False)
    out = jax.block_until_ready(out)
    assert out.shape == (batch, seq, emsize), out.shape
    assert jnp.allclose(out, ref, atol=1e-5), "VMEM path mismatch vs reference"
    assert jnp.allclose(out[0, 0], 0.0), "PAD row must embed to zeros"

    # Large-table path: HBM-resident table, per-row DMA gather into the VMEM
    # output block (forced here so both code paths are exercised on-device).
    out_hbm = embedder_forward(
        sequence, emb_table, dropout_emb=0.1, training=False, force_hbm_gather=True
    )
    out_hbm = jax.block_until_ready(out_hbm)
    assert jnp.allclose(out_hbm, ref, atol=1e-5), "HBM path mismatch vs reference"

    print("KERNEL_OK")
</pallas_src>

<mosaic_0001>
module attributes {stable_mosaic.version = 11 : i64} {
  func.func @_vmem_gather_kernel(%arg0: i32, %arg1: memref<16xi32, #tpu.memory_space<smem>>, %arg2: memref<64x32xf32, #tpu.memory_space<vmem>>, %arg3: memref<8x32xf32, #tpu.memory_space<vmem>>) attributes {dimension_semantics = [#tpu.dimension_semantics<parallel>], iteration_bounds = array<i64: 2>, scalar_prefetch = 1 : i64, scratch_operands = 0 : i64, tpu.core_type = #tpu.core_type<tc>, window_params = [{pipeline_mode = #tpu.pipeline_mode<synchronous>, transform_indices = @transform_0, window_bounds = array<i64: 64, 32>}, {transform_indices = @transform_1, window_bounds = array<i64: 8, 32>}]} {
    %c8_i32 = arith.constant 8 : i32
    %0 = arith.muli %arg0, %c8_i32 : i32
    %c0_i32 = arith.constant 0 : i32
    %1 = arith.addi %0, %c0_i32 : i32
    %2 = arith.index_cast %1 : i32 to index
    %3 = memref.load %arg1[%2] : memref<16xi32, #tpu.memory_space<smem>>
    %4 = arith.index_cast %3 : i32 to index
    %c0 = arith.constant 0 : index
    %5 = vector.load %arg2[%4, %c0] : memref<64x32xf32, #tpu.memory_space<vmem>>, vector<1x32xf32>
    %6 = arith.index_cast %c0_i32 : i32 to index
    %c0_0 = arith.constant 0 : index
    %7 = vector.load %arg3[%6, %c0_0] : memref<8x32xf32, #tpu.memory_space<vmem>>, vector<1x32xf32>
    tpu.vector_store %arg3[%6, %c0_0], %5 {strides = array<i32>} : memref<8x32xf32, #tpu.memory_space<vmem>>, vector<1x32xf32>,
    %c1_i32 = arith.constant 1 : i32
    %8 = arith.addi %0, %c1_i32 : i32
    %9 = arith.index_cast %8 : i32 to index
    %10 = memref.load %arg1[%9] : memref<16xi32, #tpu.memory_space<smem>>
    %11 = arith.index_cast %10 : i32 to index
    %c0_1 = arith.constant 0 : index
    %12 = vector.load %arg2[%11, %c0_1] : memref<64x32xf32, #tpu.memory_space<vmem>>, vector<1x32xf32>
    %13 = arith.index_cast %c1_i32 : i32 to index
    %c0_2 = arith.constant 0 : index
    %14 = vector.load %arg3[%13, %c0_2] : memref<8x32xf32, #tpu.memory_space<vmem>>, vector<1x32xf32>
    tpu.vector_store %arg3[%13, %c0_2], %12 {strides = array<i32>} : memref<8x32xf32, #tpu.memory_space<vmem>>, vector<1x32xf32>,
    %c2_i32 = arith.constant 2 : i32
    %15 = arith.addi %0, %c2_i32 : i32
    %16 = arith.index_cast %15 : i32 to index
    %17 = memref.load %arg1[%16] : memref<16xi32, #tpu.memory_space<smem>>
    %18 = arith.index_cast %17 : i32 to index
    %c0_3 = arith.constant 0 : index
    %19 = vector.load %arg2[%18, %c0_3] : memref<64x32xf32, #tpu.memory_space<vmem>>, vector<1x32xf32>
    %20 = arith.index_cast %c2_i32 : i32 to index
    %c0_4 = arith.constant 0 : index
    %21 = vector.load %arg3[%20, %c0_4] : memref<8x32xf32, #tpu.memory_space<vmem>>, vector<1x32xf32>
    tpu.vector_store %arg3[%20, %c0_4], %19 {strides = array<i32>} : memref<8x32xf32, #tpu.memory_space<vmem>>, vector<1x32xf32>,
    %c3_i32 = arith.constant 3 : i32
    %22 = arith.addi %0, %c3_i32 : i32
    %23 = arith.index_cast %22 : i32 to index
    %24 = memref.load %arg1[%23] : memref<16xi32, #tpu.memory_space<smem>>
    %25 = arith.index_cast %24 : i32 to index
    %c0_5 = arith.constant 0 : index
    %26 = vector.load %arg2[%25, %c0_5] : memref<64x32xf32, #tpu.memory_space<vmem>>, vector<1x32xf32>
    %27 = arith.index_cast %c3_i32 : i32 to index
    %c0_6 = arith.constant 0 : index
    %28 = vector.load %arg3[%27, %c0_6] : memref<8x32xf32, #tpu.memory_space<vmem>>, vector<1x32xf32>
    tpu.vector_store %arg3[%27, %c0_6], %26 {strides = array<i32>} : memref<8x32xf32, #tpu.memory_space<vmem>>, vector<1x32xf32>,
    %c4_i32 = arith.constant 4 : i32
    %29 = arith.addi %0, %c4_i32 : i32
    %30 = arith.index_cast %29 : i32 to index
    %31 = memref.load %arg1[%30] : memref<16xi32, #tpu.memory_space<smem>>
    %32 = arith.index_cast %31 : i32 to index
    %c0_7 = arith.constant 0 : index
    %33 = vector.load %arg2[%32, %c0_7] : memref<64x32xf32, #tpu.memory_space<vmem>>, vector<1x32xf32>
    %34 = arith.index_cast %c4_i32 : i32 to index
    %c0_8 = arith.constant 0 : index
    %35 = vector.load %arg3[%34, %c0_8] : memref<8x32xf32, #tpu.memory_space<vmem>>, vector<1x32xf32>
    tpu.vector_store %arg3[%34, %c0_8], %33 {strides = array<i32>} : memref<8x32xf32, #tpu.memory_space<vmem>>, vector<1x32xf32>,
    %c5_i32 = arith.constant 5 : i32
    %36 = arith.addi %0, %c5_i32 : i32
    %37 = arith.index_cast %36 : i32 to index
    %38 = memref.load %arg1[%37] : memref<16xi32, #tpu.memory_space<smem>>
    %39 = arith.index_cast %38 : i32 to index
    %c0_9 = arith.constant 0 : index
    %40 = vector.load %arg2[%39, %c0_9] : memref<64x32xf32, #tpu.memory_space<vmem>>, vector<1x32xf32>
    %41 = arith.index_cast %c5_i32 : i32 to index
    %c0_10 = arith.constant 0 : index
    %42 = vector.load %arg3[%41, %c0_10] : memref<8x32xf32, #tpu.memory_space<vmem>>, vector<1x32xf32>
    tpu.vector_store %arg3[%41, %c0_10], %40 {strides = array<i32>} : memref<8x32xf32, #tpu.memory_space<vmem>>, vector<1x32xf32>,
    %c6_i32 = arith.constant 6 : i32
    %43 = arith.addi %0, %c6_i32 : i32
    %44 = arith.index_cast %43 : i32 to index
    %45 = memref.load %arg1[%44] : memref<16xi32, #tpu.memory_space<smem>>
    %46 = arith.index_cast %45 : i32 to index
    %c0_11 = arith.constant 0 : index
    %47 = vector.load %arg2[%46, %c0_11] : memref<64x32xf32, #tpu.memory_space<vmem>>, vector<1x32xf32>
    %48 = arith.index_cast %c6_i32 : i32 to index
    %c0_12 = arith.constant 0 : index
    %49 = vector.load %arg3[%48, %c0_12] : memref<8x32xf32, #tpu.memory_space<vmem>>, vector<1x32xf32>
    tpu.vector_store %arg3[%48, %c0_12], %47 {strides = array<i32>} : memref<8x32xf32, #tpu.memory_space<vmem>>, vector<1x32xf32>,
    %c7_i32 = arith.constant 7 : i32
    %50 = arith.addi %0, %c7_i32 : i32
    %51 = arith.index_cast %50 : i32 to index
    %52 = memref.load %arg1[%51] : memref<16xi32, #tpu.memory_space<smem>>
    %53 = arith.index_cast %52 : i32 to index
    %c0_13 = arith.constant 0 : index
    %54 = vector.load %arg2[%53, %c0_13] : memref<64x32xf32, #tpu.memory_space<vmem>>, vector<1x32xf32>
    %55 = arith.index_cast %c7_i32 : i32 to index
    %c0_14 = arith.constant 0 : index
    %56 = vector.load %arg3[%55, %c0_14] : memref<8x32xf32, #tpu.memory_space<vmem>>, vector<1x32xf32>
    tpu.vector_store %arg3[%55, %c0_14], %54 {strides = array<i32>} : memref<8x32xf32, #tpu.memory_space<vmem>>, vector<1x32xf32>,
    %c8_i32_15 = arith.constant 8 : i32
    return
  }
  func.func @transform_0(%arg0: i32, %arg1: memref<16xi32, #tpu.memory_space<smem>>) -> (i32, i32) {
    %c0_i32 = arith.constant 0 : i32
    %c0_i32_0 = arith.constant 0 : i32
    %c0_i32_1 = arith.constant 0 : i32
    return %c0_i32, %c0_i32_0 : i32, i32
  }
  func.func @transform_1(%arg0: i32, %arg1: memref<16xi32, #tpu.memory_space<smem>>) -> (i32, i32) {
    %c0_i32 = arith.constant 0 : i32
    %c0_i32_0 = arith.constant 0 : i32
    return %arg0, %c0_i32 : i32, i32
  }
}

</mosaic_0001>

<llo_original>
// kernel: embedder_forward.1
$region0: #{embedder_forward.1}
  #allocation0 [shape = 'u32[]', space=smem, size = 0x4, offset = 0x4, fixed_abs, tag = 'smem constant byte address 0x4 - core index']
  #allocation1 [shape = 'u32[144,128]{1,0:T(1,128)}', space=vmem, size = 0x12000, scoped, tag = 'internal scratch']
  #allocation2 [shape = 's32[1]{0}', space=sflag, size = 0x4, scoped, tag = 'scoped memory for embedder_forward.1']
  #allocation3 [shape = 'u8[512]{0}', space=smem, size = 0x200, scoped, tag = 'prefetched SMEM operand 0']
  %s0 = inlined_call_operand.vmem [shape: s32[16], index: 0, kind: input, shape index: {}]
  %s1 = inlined_call_operand.vmem [shape: f32[64,32], index: 1, kind: input, shape index: {}]
  %s2 = inlined_call_operand.hbm [shape: f32[16,32], index: 2, kind: output, shape index: {}]
  %s3 = sld [smem:[#allocation0]]
  $region37: #{embedder_forward.1} parent=0
    _
  %s5 = ssub.s32 1, %s3
  %s6 = scalar_select 0, %s5, %s3
  %s7 = sshll.u32 %s0, 4
  %s8 = int_to_ptr.vmem [resolvable:$true] %s7
  %10 = dma.vmem_to_smem %s8, 16, [#allocation3], [#allocation2]
  %11 = dma.done [#allocation2], 16
  %12 = sfence
  $region1: #{embedder_forward.1} parent=0
    #allocation4 [shape = 'u8[8192]{0}', space=vmem, size = 0x2000, scoped, tag = 'output window, operand 0']
    #allocation5 [shape = 's32[2]{0}', space=sflag, size = 0x8, scoped, tag = 'scoped memory for embedder_forward.1']
    %13 = vsyncpa [#allocation5], 0
    %s14 = scalar_lea.sflag [#allocation5], 1
    %15 = vsyncpa %s14, 0
    loop: start=0, step=1, limit=4
    $region2: #{embedder_forward.1} parent=1 // loop_pre_header
      _
    $region3: #{embedder_forward.1} parent=1 // loop_header
      %s17 = sphi 0, %s21
      %p18 = scmp.ge.s32.totalorder %s17, 4
      %s25 = sphi 0, %s25
      %s27 = sphi 0, %s25
      %s28 = sphi 0, %s27
      %s42 = sphi 0, %s28
      %s48 = sphi 0, %s50
      %s51 = sphi 0, %s48
      %s52 = sphi 0, %s51
      %s68 = sphi 0, %s52
    $region4: #{embedder_forward.1} parent=1 // loop_header_branch
      %20 = sbr.rel (%p18) target = $region8
    $region5: #{embedder_forward.1} parent=1 // loop_body
      %s22 = ssub.s32 %s17, 1
      %s23 = ssub.s32 %s17, 2
      %s24 = sadd.s32 %s17, 1
      %s26 = sadd.s32 %s25, 1
      %p29 = scmp.eq.s32.totalorder %s17, 1
      %p30 = scmp.ne.s32.totalorder %s25, %s27
      %p31 = scmp.eq.s32.totalorder %s17, 0
      %p32 = por %p30, %p31
      %p33 = scmp.ne.s32.totalorder %s25, %s27
      %p34 = scmp.eq.s32.totalorder %s22, 1
      %p35 = por %p33, %p34
      %p36 = scmp.ne.s32.totalorder %s27, %s28
      %p37 = scmp.eq.s32.totalorder %s22, 0
      %p38 = por %p36, %p37
      %p39 = scmp.ne.s32.totalorder %s27, %s28
      %p40 = scmp.eq.s32.totalorder %s23, 1
      %p41 = por %p39, %p40
      %p43 = scmp.ne.s32.totalorder %s28, %s42
      %p44 = scmp.eq.s32.totalorder %s23, 0
      %p45 = por %p43, %p44
      %s46 = ssub.s32 %s17, %s24
      %p47 = scmp.eq.s32.totalorder %s46, 0
      %s49 = sadd.s32 %s48, 1
      %s50 = scalar_select %p47, %s48, %s49
      %p53 = pneg %p47
      %p54 = scmp.eq.s32.totalorder %s17, 1
      %p55 = por %p53, %p54
      %p56 = scmp.ne.s32.totalorder %s48, %s51
      %p57 = scmp.eq.s32.totalorder %s17, 0
      %p58 = por %p56, %p57
      %p59 = scmp.ne.s32.totalorder %s48, %s51
      %p60 = scmp.eq.s32.totalorder %s22, 1
      %p61 = por %p59, %p60
      %p62 = scmp.ne.s32.totalorder %s51, %s52
      %p63 = scmp.eq.s32.totalorder %s22, 0
      %p64 = por %p62, %p63
      %p65 = scmp.ne.s32.totalorder %s51, %s52
      %p66 = scmp.eq.s32.totalorder %s23, 1
      %p67 = por %p65, %p66
      %p69 = scmp.ne.s32.totalorder %s52, %s68
      %p70 = scmp.eq.s32.totalorder %s23, 0
      %p71 = por %p69, %p70
      %p72 = scmp.le.s32.totalorder 1, %s17
      %p73 = scmp.lt.s32.totalorder %s17, 3
      %p74 = pnand %p72, %p73
      %p75 = pneg %p74
      // Predicated region
      $region9: #{embedder_forward.1} parent=5 // pred_check
        _
      $region10: #{embedder_forward.1} parent=5 // pred_check_branch
        %77 = sbr.rel (%p74) target = $region12
      $region11: #{embedder_forward.1} parent=5 // pred_region
        %s78 = ssub.s32 %s17, 1
        // Predicated region
        $region13: #{embedder_forward.1} parent=11 // pred_check
          %p79 = pneg %p38
        $region14: #{embedder_forward.1} parent=11 // pred_check_branch
          %81 = sbr.rel (%p79) target = $region16
        $region15: #{embedder_forward.1} parent=11 // pred_region
          _
        $region16: #{embedder_forward.1} parent=11 // pred_fallthru
          _
      $region12: #{embedder_forward.1} parent=5 // pred_fallthru
        _
      %p82 = scmp.lt.s32.totalorder %s17, 2
      // Predicated region
      $region17: #{embedder_forward.1} parent=5 // pred_check
        %p83 = pneg %p82
      $region18: #{embedder_forward.1} parent=5 // pred_check_branch
        %85 = sbr.rel (%p83) target = $region20
      $region19: #{embedder_forward.1} parent=5 // pred_region
        _
      $region20: #{embedder_forward.1} parent=5 // pred_fallthru
        _
      %p86 = scmp.le.s32.totalorder 1, %s17
      %p87 = scmp.lt.s32.totalorder %s17, 3
      %p88 = pnand %p86, %p87
      %p89 = pneg %p88
      // Predicated region
      $region21: #{embedder_forward.1} parent=5 // pred_check
        _
      $region22: #{embedder_forward.1} parent=5 // pred_check_branch
        %91 = sbr.rel (%p88) target = $region24
      $region23: #{embedder_forward.1} parent=5 // pred_region
        %s92 = ssub.s32 %s17, 1
        %p93 = pneg %p38
        %p94 = pneg %p35
        %p95 = pneg %p64
        %p96 = pneg %p61
        %s97 = sand.u32 %s51, 1
        %s98 = scalar_lea.sflag [#allocation5], %s97
        %s99 = sand.u32 %s51, 1
        %s100 = smul.addr %s99, 8
        %s101 = scalar_lea.vmem [#allocation4], %s100
        %s102 = smul.u32 %s22, 8
        %s103 = sld [smem:[#allocation3 + %s102]]
        %s104 = scalar_lea.vmem %s1, %s103
        %v105 = vld [vmem:[%s104] sm:$0x1]
        %vm106 = vcmask 253952
        %107 = vst.msk [vmem:[%s101] sm:$0x1] %vm106, %v105
        %s108 = sadd.s32 %s102, 1
        %s109 = sld [smem:[#allocation3 + %s108]]
        %s110 = scalar_lea.vmem %s1, %s109
        %v111 = vld [vmem:[%s110] sm:$0x1]
        %112 = vst.msk [vmem:[%s101 + $0x1] sm:$0x1] %vm106, %v111
        %s113 = sadd.s32 %s102, 2
        %s114 = sld [smem:[#allocation3 + %s113]]
        %s115 = scalar_lea.vmem %s1, %s114
        %v116 = vld [vmem:[%s115] sm:$0x1]
        %117 = vst.msk [vmem:[%s101 + $0x2] sm:$0x1] %vm106, %v116
        %s118 = sadd.s32 %s102, 3
        %s119 = sld [smem:[#allocation3 + %s118]]
        %s120 = scalar_lea.vmem %s1, %s119
        %v121 = vld [vmem:[%s120] sm:$0x1]
        %122 = vst.msk [vmem:[%s101 + $0x3] sm:$0x1] %vm106, %v121
        %s123 = sadd.s32 %s102, 4
        %s124 = sld [smem:[#allocation3 + %s123]]
        %s125 = scalar_lea.vmem %s1, %s124
        %v126 = vld [vmem:[%s125] sm:$0x1]
        %127 = vst.msk [vmem:[%s101 + $0x4] sm:$0x1] %vm106, %v126
        %s128 = sadd.s32 %s102, 5
        %s129 = sld [smem:[#allocation3 + %s128]]
        %s130 = scalar_lea.vmem %s1, %s129
        %v131 = vld [vmem:[%s130] sm:$0x1]
        %132 = vst.msk [vmem:[%s101 + $0x5] sm:$0x1] %vm106, %v131
        %s133 = sadd.s32 %s102, 6
        %s134 = sld [smem:[#allocation3 + %s133]]
        %s135 = scalar_lea.vmem %s1, %s134
        %v136 = vld [vmem:[%s135] sm:$0x1]
        %137 = vst.msk [vmem:[%s101 + $0x6] sm:$0x1] %vm106, %v136
        %s138 = sadd.s32 %s102, 7
        %s139 = sld [smem:[#allocation3 + %s138]]
        %s140 = scalar_lea.vmem %s1, %s139
        %v141 = vld [vmem:[%s140] sm:$0x1]
        %142 = vst.msk [vmem:[%s101 + $0x7] sm:$0x1] %vm106, %v141
        %s143 = sand.u32 %s51, 1
        %s144 = scalar_lea.sflag [#allocation5], %s143
        %s145 = sand.u32 %s51, 1
        %s146 = smul.addr %s145, 8
        %s147 = scalar_lea.vmem [#allocation4], %s146
        // Predicated region
        $region25: #{embedder_forward.1} parent=23 // pred_check
          %p148 = pneg %p61
        $region26: #{embedder_forward.1} parent=23 // pred_check_branch
          %150 = sbr.rel (%p148) target = $region28
        $region27: #{embedder_forward.1} parent=23 // pred_region
          %s152 = ssub.s32 128, 128
          %153 = vsyncadd %s144, %s152
          %s154 = smul.addr %s22, 128
          %s155 = scalar_lea.hbm %s2, %s154
          %s157 = sshll.u32 %s147, 4
          %s158 = int_to_ptr.vmem [resolvable:$true] %s157
          %160 = dma.vmem_to_hbm [thread:$0]  %s158, 128, %s155, %s144
        $region28: #{embedder_forward.1} parent=23 // pred_fallthru
          _
      $region24: #{embedder_forward.1} parent=5 // pred_fallthru
        _
      %p161 = scmp.le.s32.totalorder 2, %s17
      // Predicated region
      $region29: #{embedder_forward.1} parent=5 // pred_check
        %p162 = pneg %p161
      $region30: #{embedder_forward.1} parent=5 // pred_check_branch
        %164 = sbr.rel (%p162) target = $region32
      $region31: #{embedder_forward.1} parent=5 // pred_region
        %s165 = ssub.s32 %s17, 2
        // Predicated region
        $region33: #{embedder_forward.1} parent=31 // pred_check
          %p166 = pneg %p67
        $region34: #{embedder_forward.1} parent=31 // pred_check_branch
          %168 = sbr.rel (%p166) target = $region36
        $region35: #{embedder_forward.1} parent=31 // pred_region
          %s169 = sand.u32 %s52, 1
          %s170 = scalar_lea.sflag [#allocation5], %s169
          %s171 = sand.u32 %s52, 1
          %s172 = smul.addr %s171, 8
          %s173 = scalar_lea.vmem [#allocation4], %s172
          %174 = dma.done %s170, 128
        $region36: #{embedder_forward.1} parent=31 // pred_fallthru
          _
      $region32: #{embedder_forward.1} parent=5 // pred_fallthru
        _
    $region6: #{embedder_forward.1} parent=1 // loop_footer
      %s21 = sadd.s32 1, %s17
    $region7: #{embedder_forward.1} parent=1 // loop_footer_branch
      %16 = sbr.rel target = $region3
    $region8: #{embedder_forward.1} parent=1 // loop_exit
      _
    %175 = vsyncpa [#allocation5], 1
    %s176 = scalar_lea.sflag [#allocation5], 1
    %177 = vsyncpa %s176, 1

</llo_original>
